<compile_context>
chip_gen: v7x
topology: tpu7x:2x2x1
jax: 0.10.0
libtpu: 0.0.40
codegen_flags: <defaults>
</compile_context>

<pallas_src>
import functools

import jax
import jax.numpy as jnp
from jax import lax
from jax.experimental import pallas as pl
from jax.experimental.pallas import tpu as pltpu

_LANE = 128
_SUBLANE = 8
_TARGET_BLOCK_BYTES = 1 << 20  # ~1 MiB per input block per pipeline buffer.


def _round_up(x, m):
    return (x + m - 1) // m * m


def _fold_to_vreg(x, block_rows):
    """Sum a (block_rows, 128) f32 tile down to one (8, 128) vreg (VALU adds)."""
    return jnp.sum(x.reshape(block_rows // _SUBLANE, _SUBLANE, _LANE), axis=0)


def _rmse_kernel(yhat_ref, y_ref, out_ref, acc_ref, *, total_rows, block_rows,
                 total_blocks, blocks_per_core, needs_mask):
    c = pl.program_id(0)  # TensorCore split ("parallel")
    i = pl.program_id(1)  # per-core block sweep ("arbitrary")

    @pl.when(i == 0)
    def _():
        acc_ref[...] = jnp.zeros_like(acc_ref)

    d = yhat_ref[...].astype(jnp.float32) - y_ref[...].astype(jnp.float32)

    if needs_mask:
        # Un-clamped global block index; >= total_blocks only for the (at most
        # one) duplicated block of an odd split, whose rows are fully masked.
        g = c * blocks_per_core + i
        boundary = g >= total_blocks - 1

        @pl.when(jnp.logical_not(boundary))
        def _():
            acc_ref[...] += _fold_to_vreg(d * d, block_rows)

        @pl.when(boundary)
        def _():
            row_ids = g * block_rows + lax.broadcasted_iota(
                jnp.int32, (block_rows, 1), 0)
            dm = jnp.where(row_ids < total_rows, d, 0.0)  # zero BEFORE squaring
            acc_ref[...] += _fold_to_vreg(dm * dm, block_rows)
    else:
        acc_ref[...] += _fold_to_vreg(d * d, block_rows)

    @pl.when(i == pl.num_programs(1) - 1)
    def _():
        out_ref[0] = acc_ref[...]


def rmse_loss(yhat, y, eps: float = 1e-8):
    """sqrt(mean((yhat - y)**2) + eps), matching torch RMSELoss semantics."""
    assert yhat.shape == y.shape, "yhat and y must have the same shape"
    n = int(yhat.size)
    assert n > 0

    yhat_f = yhat.reshape(-1)
    y_f = y.reshape(-1)

    # Zero-pad only a sub-128-element tail (identical zero pad on both inputs
    # contributes 0 to the sum of squares).
    rem = n % _LANE
    if rem != 0:
        # TODO(synk): a non-128-multiple element count forces one pad copy.
        pad = _LANE - rem
        yhat_f = jnp.pad(yhat_f, (0, pad))
        y_f = jnp.pad(y_f, (0, pad))

    rows = yhat_f.shape[0] // _LANE
    yhat_2d = yhat_f.reshape(rows, _LANE)
    y_2d = y_f.reshape(rows, _LANE)

    # Dtype-aware block sizing: keep ~1 MiB per input block regardless of
    # input width (2048 rows for f32, 4096 for bf16/fp16).
    itemsize = max(jnp.dtype(yhat.dtype).itemsize, jnp.dtype(y.dtype).itemsize)
    target_rows = max(
        _SUBLANE,
        (_TARGET_BLOCK_BYTES // (_LANE * itemsize)) // _SUBLANE * _SUBLANE)
    block_rows = min(target_rows, _round_up(rows, _SUBLANE))

    total_blocks = -(-rows // block_rows)
    blocks_per_core = -(-total_blocks // 2)
    needs_mask = (rows % block_rows != 0) or (total_blocks % 2 != 0)

    def in_index_map(c, i):
        g = c * blocks_per_core + i
        # Clamp the (at most one) duplicated block of an odd split back
        # in-bounds; its rows are zeroed by the in-kernel mask.
        return (jnp.minimum(g, total_blocks - 1), 0)

    kernel = functools.partial(
        _rmse_kernel,
        total_rows=rows,
        block_rows=block_rows,
        total_blocks=total_blocks,
        blocks_per_core=blocks_per_core,
        needs_mask=needs_mask,
    )

    cost = pl.CostEstimate(
        flops=3 * n,
        transcendentals=0,
        bytes_accessed=2 * n * itemsize + 2 * _SUBLANE * _LANE * 4,
    )

    partial_sums = pl.pallas_call(
        kernel,
        out_shape=jax.ShapeDtypeStruct((2, _SUBLANE, _LANE), jnp.float32),
        grid_spec=pltpu.PrefetchScalarGridSpec(
            num_scalar_prefetch=0,
            grid=(2, blocks_per_core),
            in_specs=[
                pl.BlockSpec((block_rows, _LANE), in_index_map),
                pl.BlockSpec((block_rows, _LANE), in_index_map),
            ],
            out_specs=pl.BlockSpec((1, _SUBLANE, _LANE), lambda c, i: (c, 0, 0)),
            scratch_shapes=[pltpu.VMEM((_SUBLANE, _LANE), jnp.float32)],
        ),
        compiler_params=pltpu.CompilerParams(
            dimension_semantics=("parallel", "arbitrary"),
        ),
        cost_estimate=cost,
    )(yhat_2d, y_2d)

    # Tiny cross-core / cross-lane combine done in plain JAX.
    return jnp.sqrt(jnp.sum(partial_sums) * (1.0 / n) + float(eps))


if __name__ == "__main__":
    key = jax.random.PRNGKey(0)
    k1, k2, k3, k4, k5, k6 = jax.random.split(key, 6)

    # 1) Small regression-style output (batch, C, H, W); 128-aligned element
    #    count -> zero-copy reshape, single (masked-duplicate) block per core.
    yhat = jax.random.normal(k1, (2, 4, 16, 16), dtype=jnp.float32)
    y = jax.random.normal(k2, (2, 4, 16, 16), dtype=jnp.float32)
    loss = jax.block_until_ready(rmse_loss(yhat, y))
    ref = jnp.sqrt(jnp.mean((yhat - y) ** 2) + 1e-8)
    assert jnp.allclose(loss, ref, rtol=1e-5, atol=1e-6), (loss, ref)

    # 2) Ragged case: sub-128 tail pad + non-multiple-of-8 rows + boundary mask.
    yhat2 = jax.random.normal(k3, (9, 3, 70, 71), dtype=jnp.float32)
    y2 = jax.random.normal(k4, (9, 3, 70, 71), dtype=jnp.float32)
    loss2 = jax.block_until_ready(rmse_loss(yhat2, y2))
    ref2 = jnp.sqrt(jnp.mean((yhat2 - y2) ** 2) + 1e-8)
    assert jnp.allclose(loss2, ref2, rtol=1e-5, atol=1e-6), (loss2, ref2)

    # 3) Even multi-block case: exercises the unmasked steady-state path and
    #    the one-block-per-core split (total_blocks == 2).
    yhat3 = jax.random.normal(k5, (2, 16, 128, 128), dtype=jnp.float32)
    y3 = jax.random.normal(k6, (2, 16, 128, 128), dtype=jnp.float32)
    loss3 = jax.block_until_ready(rmse_loss(yhat3, y3))
    ref3 = jnp.sqrt(jnp.mean((yhat3 - y3) ** 2) + 1e-8)
    assert jnp.allclose(loss3, ref3, rtol=1e-5, atol=1e-6), (loss3, ref3)

    print("KERNEL_OK")
</pallas_src>

<mosaic_0001>
module attributes {stable_mosaic.version = 11 : i64} {
  func.func @_rmse_kernel(%arg0: i32, %arg1: i32, %arg2: memref<16x128xf32, #tpu.memory_space<vmem>>, %arg3: memref<16x128xf32, #tpu.memory_space<vmem>>, %arg4: memref<1x8x128xf32, #tpu.memory_space<vmem>>, %arg5: memref<8x128xf32, #tpu.memory_space<vmem>>) attributes {dimension_semantics = [#tpu.dimension_semantics<parallel>, #tpu.dimension_semantics<arbitrary>], iteration_bounds = array<i64: 2, 1>, scalar_prefetch = 0 : i64, scratch_operands = 1 : i64, tpu.core_type = #tpu.core_type<tc>, window_params = [{transform_indices = @transform_0, window_bounds = array<i64: 16, 128>}, {transform_indices = @transform_1, window_bounds = array<i64: 16, 128>}, {transform_indices = @transform_2, window_bounds = array<i64: 1, 8, 128>}]} {
    %c0_i32 = arith.constant 0 : i32
    %0 = arith.cmpi eq, %arg1, %c0_i32 : i32
    %1 = arith.extui %0 : i1 to i32
    %c0_i32_0 = arith.constant 0 : i32
    %2 = arith.cmpi ne, %1, %c0_i32_0 : i32
    scf.if %2 {
      %cst = arith.constant 0.000000e+00 : f32
      %17 = vector.broadcast %cst : f32 to vector<8x128xf32>
      %c0_9 = arith.constant 0 : index
      %c0_10 = arith.constant 0 : index
      %18 = vector.load %arg5[%c0_9, %c0_10] : memref<8x128xf32, #tpu.memory_space<vmem>>, vector<8x128xf32>
      tpu.vector_store %arg5[%c0_9, %c0_10], %17 {strides = array<i32>} : memref<8x128xf32, #tpu.memory_space<vmem>>, vector<8x128xf32>,
    } else {
    }
    %c0 = arith.constant 0 : index
    %c0_1 = arith.constant 0 : index
    %3 = vector.load %arg2[%c0, %c0_1] : memref<16x128xf32, #tpu.memory_space<vmem>>, vector<16x128xf32>
    %c0_2 = arith.constant 0 : index
    %c0_3 = arith.constant 0 : index
    %4 = vector.load %arg3[%c0_2, %c0_3] : memref<16x128xf32, #tpu.memory_space<vmem>>, vector<16x128xf32>
    %5 = arith.subf %3, %4 : vector<16x128xf32>
    %c1_i32 = arith.constant 1 : i32
    %6 = arith.muli %arg0, %c1_i32 : i32
    %7 = arith.addi %6, %arg1 : i32
    %c0_i32_4 = arith.constant 0 : i32
    %8 = arith.cmpi sge, %7, %c0_i32_4 : i32
    %true = arith.constant true
    %9 = arith.xori %8, %true : i1
    %10 = arith.extui %9 : i1 to i32
    %c0_i32_5 = arith.constant 0 : i32
    %11 = arith.cmpi ne, %10, %c0_i32_5 : i32
    scf.if %11 {
      %c0_9 = arith.constant 0 : index
      %c0_10 = arith.constant 0 : index
      %17 = vector.load %arg5[%c0_9, %c0_10] : memref<8x128xf32, #tpu.memory_space<vmem>>, vector<8x128xf32>
      %18 = arith.mulf %5, %5 : vector<16x128xf32>
      %19 = vector.shape_cast %18 : vector<16x128xf32> to vector<2x8x128xf32>
      %cst = arith.constant dense<0.000000e+00> : vector<8x128xf32>
      %20 = vector.multi_reduction <add>, %19, %cst [0] : vector<2x8x128xf32> to vector<8x128xf32>
      %21 = arith.addf %17, %20 : vector<8x128xf32>
      %c0_11 = arith.constant 0 : index
      %c0_12 = arith.constant 0 : index
      %22 = vector.load %arg5[%c0_11, %c0_12] : memref<8x128xf32, #tpu.memory_space<vmem>>, vector<8x128xf32>
      tpu.vector_store %arg5[%c0_11, %c0_12], %21 {strides = array<i32>} : memref<8x128xf32, #tpu.memory_space<vmem>>, vector<8x128xf32>,
    } else {
    }
    %12 = arith.extui %8 : i1 to i32
    %c0_i32_6 = arith.constant 0 : i32
    %13 = arith.cmpi ne, %12, %c0_i32_6 : i32
    scf.if %13 {
      %c16_i32 = arith.constant 16 : i32
      %17 = arith.muli %7, %c16_i32 : i32
      %18 = tpu.iota {dimensions = array<i32: 0>} : vector<16x1xi32>
      %19 = vector.broadcast %17 : i32 to vector<16x1xi32>
      %20 = arith.addi %19, %18 : vector<16x1xi32>
      %c16_i32_9 = arith.constant 16 : i32
      %21 = vector.broadcast %c16_i32_9 : i32 to vector<16x1xi32>
      %22 = arith.cmpi slt, %20, %21 : vector<16x1xi32>
      %cst = arith.constant 0.000000e+00 : f32
      %23 = vector.shape_cast %22 : vector<16x1xi1> to vector<16x1xi1>
      %24 = vector.broadcast %23 : vector<16x1xi1> to vector<16x128xi1>
      %25 = vector.broadcast %cst : f32 to vector<16x128xf32>
      %26 = arith.select %24, %5, %25 : vector<16x128xi1>, vector<16x128xf32>
      %c0_10 = arith.constant 0 : index
      %c0_11 = arith.constant 0 : index
      %27 = vector.load %arg5[%c0_10, %c0_11] : memref<8x128xf32, #tpu.memory_space<vmem>>, vector<8x128xf32>
      %28 = arith.mulf %26, %26 : vector<16x128xf32>
      %29 = vector.shape_cast %28 : vector<16x128xf32> to vector<2x8x128xf32>
      %cst_12 = arith.constant dense<0.000000e+00> : vector<8x128xf32>
      %30 = vector.multi_reduction <add>, %29, %cst_12 [0] : vector<2x8x128xf32> to vector<8x128xf32>
      %31 = arith.addf %27, %30 : vector<8x128xf32>
      %c0_13 = arith.constant 0 : index
      %c0_14 = arith.constant 0 : index
      %32 = vector.load %arg5[%c0_13, %c0_14] : memref<8x128xf32, #tpu.memory_space<vmem>>, vector<8x128xf32>
      tpu.vector_store %arg5[%c0_13, %c0_14], %31 {strides = array<i32>} : memref<8x128xf32, #tpu.memory_space<vmem>>, vector<8x128xf32>,
    } else {
    }
    %c0_i32_7 = arith.constant 0 : i32
    %14 = arith.cmpi eq, %arg1, %c0_i32_7 : i32
    %15 = arith.extui %14 : i1 to i32
    %c0_i32_8 = arith.constant 0 : i32
    %16 = arith.cmpi ne, %15, %c0_i32_8 : i32
    scf.if %16 {
      %c0_9 = arith.constant 0 : index
      %c0_10 = arith.constant 0 : index
      %17 = vector.load %arg5[%c0_9, %c0_10] : memref<8x128xf32, #tpu.memory_space<vmem>>, vector<8x128xf32>
      %c0_11 = arith.constant 0 : index
      %c0_12 = arith.constant 0 : index
      %c0_13 = arith.constant 0 : index
      %18 = vector.load %arg4[%c0_11, %c0_12, %c0_13] : memref<1x8x128xf32, #tpu.memory_space<vmem>>, vector<1x8x128xf32>
      %19 = vector.shape_cast %18 : vector<1x8x128xf32> to vector<8x128xf32>
      %20 = vector.shape_cast %17 : vector<8x128xf32> to vector<1x8x128xf32>
      tpu.vector_store %arg4[%c0_11, %c0_12, %c0_13], %20 {strides = array<i32>} : memref<1x8x128xf32, #tpu.memory_space<vmem>>, vector<1x8x128xf32>,
    } else {
    }
    return
  }
  func.func @transform_0(%arg0: i32, %arg1: i32) -> (i32, i32) {
    %c1_i32 = arith.constant 1 : i32
    %0 = arith.muli %arg0, %c1_i32 : i32
    %1 = arith.addi %0, %arg1 : i32
    %c0_i32 = arith.constant 0 : i32
    %2 = arith.minsi %1, %c0_i32 : i32
    %c0_i32_0 = arith.constant 0 : i32
    %c0_i32_1 = arith.constant 0 : i32
    return %2, %c0_i32_0 : i32, i32
  }
  func.func @transform_1(%arg0: i32, %arg1: i32) -> (i32, i32) {
    %c1_i32 = arith.constant 1 : i32
    %0 = arith.muli %arg0, %c1_i32 : i32
    %1 = arith.addi %0, %arg1 : i32
    %c0_i32 = arith.constant 0 : i32
    %2 = arith.minsi %1, %c0_i32 : i32
    %c0_i32_0 = arith.constant 0 : i32
    %c0_i32_1 = arith.constant 0 : i32
    return %2, %c0_i32_0 : i32, i32
  }
  func.func @transform_2(%arg0: i32, %arg1: i32) -> (i32, i32, i32) {
    %c0_i32 = arith.constant 0 : i32
    %c0_i32_0 = arith.constant 0 : i32
    %c0_i32_1 = arith.constant 0 : i32
    return %arg0, %c0_i32, %c0_i32_0 : i32, i32, i32
  }
}

</mosaic_0001>

<llo_original>
// kernel: tpu_custom_call.1
$region0: #{tpu_custom_call.1}
  #allocation0 [shape = 'u32[]', space=smem, size = 0x4, offset = 0x4, fixed_abs, tag = 'smem constant byte address 0x4 - core index']
  #allocation1 [shape = 'u32[144,128]{1,0:T(1,128)}', space=vmem, size = 0x12000, scoped, tag = 'internal scratch']
  #allocation2 [shape = 'f32[8,128]{1,0:T(8,128)}', space=vmem, size = 0x1000, scoped, tag = 'scratch operand']
  %s0 = inlined_call_operand.hbm [shape: f32[16,128], index: 0, kind: input, shape index: {}]
  %s1 = inlined_call_operand.hbm [shape: f32[16,128], index: 1, kind: input, shape index: {}]
  %s2 = inlined_call_operand.hbm [shape: f32[2,8,128], index: 2, kind: output, shape index: {}]
  %s3 = sld [smem:[#allocation0]]
  $region65: #{tpu_custom_call.1} parent=0
    _
  %s5 = ssub.s32 1, %s3
  %s6 = scalar_select 0, %s5, %s3
  $region1: #{tpu_custom_call.1} parent=0
    #allocation3 [shape = 'u8[16384]{0}', space=vmem, size = 0x4000, scoped, tag = 'input window, operand 0']
    #allocation4 [shape = 's32[2]{0}', space=sflag, size = 0x8, scoped, tag = 'scoped memory for tpu_custom_call.1']
    #allocation5 [shape = 's32[2]{0}', space=sflag, size = 0x8, scoped, tag = 'scoped memory for tpu_custom_call.1']
    #allocation6 [shape = 'u8[16384]{0}', space=vmem, size = 0x4000, scoped, tag = 'input window, operand 1']
    #allocation7 [shape = 's32[2]{0}', space=sflag, size = 0x8, scoped, tag = 'scoped memory for tpu_custom_call.1']
    #allocation8 [shape = 'u8[8192]{0}', space=vmem, size = 0x2000, scoped, tag = 'output window, operand 0']
    %7 = vsyncpa [#allocation4], 0
    %s8 = scalar_lea.sflag [#allocation4], 1
    %9 = vsyncpa %s8, 0
    %10 = vsyncpa [#allocation7], 0
    %s11 = scalar_lea.sflag [#allocation7], 1
    %12 = vsyncpa %s11, 0
    %13 = vsyncpa [#allocation5], 0
    %s14 = scalar_lea.sflag [#allocation5], 1
    %15 = vsyncpa %s14, 0
    loop: start=0, step=1, limit=4
    $region2: #{tpu_custom_call.1} parent=1 // loop_pre_header
      _
    $region3: #{tpu_custom_call.1} parent=1 // loop_header
      %s17 = sphi 0, %s21
      %p18 = scmp.ge.s32.totalorder %s17, 4
      %s24 = sphi 0, %s36
      %s25 = sphi 0, %s32
      %s26 = sphi 0, %s24
      %s27 = sphi 0, %s25
      %s28 = sphi 0, %s26
      %s29 = sphi 0, %s27
      %s45 = sphi 0, %s47
      %s48 = sphi 0, %s45
      %s49 = sphi 0, %s48
      %s65 = sphi 0, %s49
      %s77 = sphi 0, %s79
      %s80 = sphi 0, %s77
      %s81 = sphi 0, %s80
      %s97 = sphi 0, %s81
      %s103 = sphi 0, %s105
      %s106 = sphi 0, %s103
      %s107 = sphi 0, %s106
      %s123 = sphi 0, %s107
    $region4: #{tpu_custom_call.1} parent=1 // loop_header_branch
      %20 = sbr.rel (%p18) target = $region8
    $region5: #{tpu_custom_call.1} parent=1 // loop_body
      %s22 = ssub.s32 %s17, 1
      %s23 = ssub.s32 %s17, 2
      %s30 = sadd.s32 1, %s25
      %p31 = scmp.ge.s32.totalorder %s30, 1
      %s32 = scalar_select %p31, 0, %s30
      %s33 = sadd.s32 1, %s24
      %s34 = scalar_select %p31, %s33, %s24
      %p35 = scmp.ge.s32.totalorder %s34, 2
      %s36 = scalar_select %p35, 0, %s34
      %s37 = sadd.s32 %s24, %s25
      %p38 = scmp.lt.s32.totalorder %s37, 0
      %s39 = scalar_select %p38, %s37, 0
      %s40 = sadd.s32 %s36, %s32
      %p41 = scmp.lt.s32.totalorder %s40, 0
      %s42 = scalar_select %p41, %s40, 0
      %s43 = ssub.s32 %s39, %s42
      %p44 = scmp.eq.s32.totalorder %s43, 0
      %s46 = sadd.s32 %s45, 1
      %s47 = scalar_select %p44, %s45, %s46
      %p50 = pneg %p44
      %p51 = scmp.eq.s32.totalorder %s17, 1
      %p52 = por %p50, %p51
      %p53 = scmp.ne.s32.totalorder %s45, %s48
      %p54 = scmp.eq.s32.totalorder %s17, 0
      %p55 = por %p53, %p54
      %p56 = scmp.ne.s32.totalorder %s45, %s48
      %p57 = scmp.eq.s32.totalorder %s22, 1
      %p58 = por %p56, %p57
      %p59 = scmp.ne.s32.totalorder %s48, %s49
      %p60 = scmp.eq.s32.totalorder %s22, 0
      %p61 = por %p59, %p60
      %p62 = scmp.ne.s32.totalorder %s48, %s49
      %p63 = scmp.eq.s32.totalorder %s23, 1
      %p64 = por %p62, %p63
      %p66 = scmp.ne.s32.totalorder %s49, %s65
      %p67 = scmp.eq.s32.totalorder %s23, 0
      %p68 = por %p66, %p67
      %s69 = sadd.s32 %s24, %s25
      %p70 = scmp.lt.s32.totalorder %s69, 0
      %s71 = scalar_select %p70, %s69, 0
      %s72 = sadd.s32 %s36, %s32
      %p73 = scmp.lt.s32.totalorder %s72, 0
      %s74 = scalar_select %p73, %s72, 0
      %s75 = ssub.s32 %s71, %s74
      %p76 = scmp.eq.s32.totalorder %s75, 0
      %s78 = sadd.s32 %s77, 1
      %s79 = scalar_select %p76, %s77, %s78
      %p82 = pneg %p76
      %p83 = scmp.eq.s32.totalorder %s17, 1
      %p84 = por %p82, %p83
      %p85 = scmp.ne.s32.totalorder %s77, %s80
      %p86 = scmp.eq.s32.totalorder %s17, 0
      %p87 = por %p85, %p86
      %p88 = scmp.ne.s32.totalorder %s77, %s80
      %p89 = scmp.eq.s32.totalorder %s22, 1
      %p90 = por %p88, %p89
      %p91 = scmp.ne.s32.totalorder %s80, %s81
      %p92 = scmp.eq.s32.totalorder %s22, 0
      %p93 = por %p91, %p92
      %p94 = scmp.ne.s32.totalorder %s80, %s81
      %p95 = scmp.eq.s32.totalorder %s23, 1
      %p96 = por %p94, %p95
      %p98 = scmp.ne.s32.totalorder %s81, %s97
      %p99 = scmp.eq.s32.totalorder %s23, 0
      %p100 = por %p98, %p99
      %s101 = ssub.s32 %s24, %s36
      %p102 = scmp.eq.s32.totalorder %s101, 0
      %s104 = sadd.s32 %s103, 1
      %s105 = scalar_select %p102, %s103, %s104
      %p108 = pneg %p102
      %p109 = scmp.eq.s32.totalorder %s17, 1
      %p110 = por %p108, %p109
      %p111 = scmp.ne.s32.totalorder %s103, %s106
      %p112 = scmp.eq.s32.totalorder %s17, 0
      %p113 = por %p111, %p112
      %p114 = scmp.ne.s32.totalorder %s103, %s106
      %p115 = scmp.eq.s32.totalorder %s22, 1
      %p116 = por %p114, %p115
      %p117 = scmp.ne.s32.totalorder %s106, %s107
      %p118 = scmp.eq.s32.totalorder %s22, 0
      %p119 = por %p117, %p118
      %p120 = scmp.ne.s32.totalorder %s106, %s107
      %p121 = scmp.eq.s32.totalorder %s23, 1
      %p122 = por %p120, %p121
      %p124 = scmp.ne.s32.totalorder %s107, %s123
      %p125 = scmp.eq.s32.totalorder %s23, 0
      %p126 = por %p124, %p125
      %p127 = scmp.le.s32.totalorder 1, %s17
      %p128 = scmp.lt.s32.totalorder %s17, 3
      %p129 = pnand %p127, %p128
      %p130 = pneg %p129
      // Predicated region
      $region9: #{tpu_custom_call.1} parent=5 // pred_check
        _
      $region10: #{tpu_custom_call.1} parent=5 // pred_check_branch
        %132 = sbr.rel (%p129) target = $region12
      $region11: #{tpu_custom_call.1} parent=5 // pred_region
        %s133 = ssub.s32 %s17, 1
      $region12: #{tpu_custom_call.1} parent=5 // pred_fallthru
        _
      %p134 = scmp.lt.s32.totalorder %s17, 2
      // Predicated region
      $region13: #{tpu_custom_call.1} parent=5 // pred_check
        %p135 = pneg %p134
      $region14: #{tpu_custom_call.1} parent=5 // pred_check_branch
        %137 = sbr.rel (%p135) target = $region16
      $region15: #{tpu_custom_call.1} parent=5 // pred_region
        // Predicated region
        $region17: #{tpu_custom_call.1} parent=15 // pred_check
          %p138 = pneg %p55
        $region18: #{tpu_custom_call.1} parent=15 // pred_check_branch
          %140 = sbr.rel (%p138) target = $region20
        $region19: #{tpu_custom_call.1} parent=15 // pred_region
          %s141 = sand.u32 %s45, 1
          %s142 = scalar_lea.sflag [#allocation4], %s141
          %s143 = sand.u32 %s45, 1
          %s144 = smul.addr %s143, 16
          %s145 = scalar_lea.vmem [#allocation3], %s144
          %s146 = sadd.s32 %s24, %s25
          %p147 = scmp.lt.s32.totalorder %s146, 0
          %s148 = scalar_select %p147, %s146, 0
          %s149 = smul.u32 2, %s148
          %s151 = ssub.s32 256, 256
          %152 = vsyncadd %s142, %s151
          %s153 = smul.addr %s149, 128
          %s154 = scalar_lea.hbm %s0, %s153
          %s155 = sshll.u32 %s145, 4
          %s156 = int_to_ptr.vmem [resolvable:$true] %s155
          %161 = dma.hbm_to_vmem [thread:$0]  %s154, 256, %s156, %s142, 128, 128, 8
        $region20: #{tpu_custom_call.1} parent=15 // pred_fallthru
          _
        // Predicated region
        $region21: #{tpu_custom_call.1} parent=15 // pred_check
          %p162 = pneg %p87
        $region22: #{tpu_custom_call.1} parent=15 // pred_check_branch
          %164 = sbr.rel (%p162) target = $region24
        $region23: #{tpu_custom_call.1} parent=15 // pred_region
          %s165 = sand.u32 %s77, 1
          %s166 = scalar_lea.sflag [#allocation7], %s165
          %s167 = sand.u32 %s77, 1
          %s168 = smul.addr %s167, 16
          %s169 = scalar_lea.vmem [#allocation6], %s168
          %s170 = sadd.s32 %s24, %s25
          %p171 = scmp.lt.s32.totalorder %s170, 0
          %s172 = scalar_select %p171, %s170, 0
          %s173 = smul.u32 2, %s172
          %s175 = ssub.s32 256, 256
          %176 = vsyncadd %s166, %s175
          %s177 = smul.addr %s173, 128
          %s178 = scalar_lea.hbm %s1, %s177
          %s179 = sshll.u32 %s169, 4
          %s180 = int_to_ptr.vmem [resolvable:$true] %s179
          %185 = dma.hbm_to_vmem [thread:$0]  %s178, 256, %s180, %s166, 128, 128, 8
        $region24: #{tpu_custom_call.1} parent=15 // pred_fallthru
          _
      $region16: #{tpu_custom_call.1} parent=5 // pred_fallthru
        _
      %p186 = scmp.le.s32.totalorder 1, %s17
      %p187 = scmp.lt.s32.totalorder %s17, 3
      %p188 = pnand %p186, %p187
      %p189 = pneg %p188
      // Predicated region
      $region25: #{tpu_custom_call.1} parent=5 // pred_check
        _
      $region26: #{tpu_custom_call.1} parent=5 // pred_check_branch
        %191 = sbr.rel (%p188) target = $region28
      $region27: #{tpu_custom_call.1} parent=5 // pred_region
        %s192 = ssub.s32 %s17, 1
        %s193 = sand.u32 %s48, 1
        %s194 = scalar_lea.sflag [#allocation4], %s193
        %s195 = sand.u32 %s48, 1
        %s196 = smul.addr %s195, 16
        %s197 = scalar_lea.vmem [#allocation3], %s196
        // Predicated region
        $region29: #{tpu_custom_call.1} parent=27 // pred_check
          %p198 = pneg %p61
        $region30: #{tpu_custom_call.1} parent=27 // pred_check_branch
          %200 = sbr.rel (%p198) target = $region32
        $region31: #{tpu_custom_call.1} parent=27 // pred_region
          %201 = dma.done %s194, 256
        $region32: #{tpu_custom_call.1} parent=27 // pred_fallthru
          _
        %s202 = sand.u32 %s80, 1
        %s203 = scalar_lea.sflag [#allocation7], %s202
        %s204 = sand.u32 %s80, 1
        %s205 = smul.addr %s204, 16
        %s206 = scalar_lea.vmem [#allocation6], %s205
        // Predicated region
        $region33: #{tpu_custom_call.1} parent=27 // pred_check
          %p207 = pneg %p93
        $region34: #{tpu_custom_call.1} parent=27 // pred_check_branch
          %209 = sbr.rel (%p207) target = $region36
        $region35: #{tpu_custom_call.1} parent=27 // pred_region
          %210 = dma.done %s203, 256
        $region36: #{tpu_custom_call.1} parent=27 // pred_fallthru
          _
        %s211 = sand.u32 %s48, 1
        %s212 = scalar_lea.sflag [#allocation4], %s211
        %s213 = sand.u32 %s48, 1
        %s214 = smul.addr %s213, 16
        %s215 = scalar_lea.vmem [#allocation3], %s214
        %p216 = pneg %p61
        %p217 = pneg %p58
        %s218 = sand.u32 %s80, 1
        %s219 = scalar_lea.sflag [#allocation7], %s218
        %s220 = sand.u32 %s80, 1
        %s221 = smul.addr %s220, 16
        %s222 = scalar_lea.vmem [#allocation6], %s221
        %p223 = pneg %p93
        %p224 = pneg %p90
        %p225 = pneg %p119
        %p226 = pneg %p116
        %s227 = sand.u32 %s106, 1
        %s228 = scalar_lea.sflag [#allocation5], %s227
        %s229 = sand.u32 %s106, 1
        %s230 = smul.addr %s229, 8
        %s231 = scalar_lea.vmem [#allocation8], %s230
        %s232 = sadd.s32 %s26, %s27
        %p233 = scmp.lt.s32.totalorder %s232, 0
        %s234 = scalar_select %p233, %s232, 0
        %s235 = smul.u32 2, %s234
        %s236 = sadd.s32 %s26, %s27
        %p237 = scmp.lt.s32.totalorder %s236, 0
        %s238 = scalar_select %p237, %s236, 0
        %s239 = smul.u32 2, %s238
        %p240 = scmp.eq.s32.totalorder %s27, 0
        // Predicated region
        $region37: #{tpu_custom_call.1} parent=27 // pred_check
          %p241 = pneg %p240
        $region38: #{tpu_custom_call.1} parent=27 // pred_check_branch
          %243 = sbr.rel (%p241) target = $region40
        $region39: #{tpu_custom_call.1} parent=27 // pred_region
          %244 = vst [vmem:[#allocation2] sm:$0xff] 0.0
        $region40: #{tpu_custom_call.1} parent=27 // pred_fallthru
          _
        %v245 = vld [vmem:[%s197] sm:$0xff]
        %v246 = vld [vmem:[%s197 + $0x8] sm:$0xff]
        %v247 = vld [vmem:[%s206] sm:$0xff]
        %v248 = vld [vmem:[%s206 + $0x8] sm:$0xff]
        %v249 = vsub.f32 %v245, %v247
        %v250 = vsub.f32 %v246, %v248
        %s251 = sadd.s32 %s26, %s27
        %p252 = scmp.ge.s32.totalorder %s251, 0
        %p253 = scmp.lt.s32.totalorder %s251, 0
        // Predicated region
        $region41: #{tpu_custom_call.1} parent=27 // pred_check
          %p254 = pneg %p253
        $region42: #{tpu_custom_call.1} parent=27 // pred_check_branch
          %256 = sbr.rel (%p254) target = $region44
        $region43: #{tpu_custom_call.1} parent=27 // pred_region
          %v257 = vld [vmem:[#allocation2] sm:$0xff]
          %v258 = vmul.f32 %v249, %v249
          %v259 = vmul.f32 %v250, %v250
          %v260 = vadd.f32 %v258, %v259
          %v261 = vadd.f32 %v257, %v260
          %262 = vst [vmem:[#allocation2] sm:$0xff] %v261
        $region44: #{tpu_custom_call.1} parent=27 // pred_fallthru
          _
        // Predicated region
        $region45: #{tpu_custom_call.1} parent=27 // pred_check
          %p263 = pneg %p252
        $region46: #{tpu_custom_call.1} parent=27 // pred_check_branch
          %265 = sbr.rel (%p263) target = $region48
        $region47: #{tpu_custom_call.1} parent=27 // pred_region
          %s266 = smul.u32 %s251, 16
          %v267 = vlaneseq
          %v268 = vshrl.u32 %v267, 7
          %v269 = vadd.s32 %v268, 8
          %v270 = vstv %s266
          %v271 = vadd.s32 %v270, %v268
          %v272 = vadd.s32 %v270, %v269
          %vm273 = vcmp.lt.s32.totalorder %v271, 16
          %vm274 = vcmp.lt.s32.totalorder %v272, 16
          %v275 = vsel %vm273, 1, 0
          %v276 = vsel %vm274, 1, 0
          %vm277 = vcmp.eq.s32.totalorder %v275, 1
          %vm278 = vcmp.eq.s32.totalorder %v276, 1
          %v279 = vsel %vm277, %v249, 0.0
          %v280 = vsel %vm278, %v250, 0.0
          %v281 = vld [vmem:[#allocation2] sm:$0xff]
          %v282 = vmul.f32 %v279, %v279
          %v283 = vmul.f32 %v280, %v280
          %v284 = vadd.f32 %v282, %v283
          %v285 = vadd.f32 %v281, %v284
          %286 = vst [vmem:[#allocation2] sm:$0xff] %v285
        $region48: #{tpu_custom_call.1} parent=27 // pred_fallthru
          _
        // Predicated region
        $region49: #{tpu_custom_call.1} parent=27 // pred_check
          %p287 = pneg %p240
        $region50: #{tpu_custom_call.1} parent=27 // pred_check_branch
          %289 = sbr.rel (%p287) target = $region52
        $region51: #{tpu_custom_call.1} parent=27 // pred_region
          %v290 = vld [vmem:[#allocation2] sm:$0xff]
          %291 = vst [vmem:[%s231] sm:$0xff] %v290
        $region52: #{tpu_custom_call.1} parent=27 // pred_fallthru
          _
        %s292 = sand.u32 %s106, 1
        %s293 = scalar_lea.sflag [#allocation5], %s292
        %s294 = sand.u32 %s106, 1
        %s295 = smul.addr %s294, 8
        %s296 = scalar_lea.vmem [#allocation8], %s295
        // Predicated region
        $region53: #{tpu_custom_call.1} parent=27 // pred_check
          %p297 = pneg %p116
        $region54: #{tpu_custom_call.1} parent=27 // pred_check_branch
          %299 = sbr.rel (%p297) target = $region56
        $region55: #{tpu_custom_call.1} parent=27 // pred_region
          %s301 = ssub.s32 128, 128
          %302 = vsyncadd %s293, %s301
          %s303 = smul.addr %s26, 128
          %s304 = scalar_lea.hbm %s2, %s303
          %s306 = sshll.u32 %s296, 4
          %s307 = int_to_ptr.vmem [resolvable:$true] %s306
          %309 = dma.vmem_to_hbm [thread:$0]  %s307, 128, %s304, %s293
        $region56: #{tpu_custom_call.1} parent=27 // pred_fallthru
          _
      $region28: #{tpu_custom_call.1} parent=5 // pred_fallthru
        _
      %p310 = scmp.le.s32.totalorder 2, %s17
      // Predicated region
      $region57: #{tpu_custom_call.1} parent=5 // pred_check
        %p311 = pneg %p310
      $region58: #{tpu_custom_call.1} parent=5 // pred_check_branch
        %313 = sbr.rel (%p311) target = $region60
      $region59: #{tpu_custom_call.1} parent=5 // pred_region
        %s314 = ssub.s32 %s17, 2
        // Predicated region
        $region61: #{tpu_custom_call.1} parent=59 // pred_check
          %p315 = pneg %p122
        $region62: #{tpu_custom_call.1} parent=59 // pred_check_branch
          %317 = sbr.rel (%p315) target = $region64
        $region63: #{tpu_custom_call.1} parent=59 // pred_region
          %s318 = sand.u32 %s107, 1
          %s319 = scalar_lea.sflag [#allocation5], %s318
          %s320 = sand.u32 %s107, 1
          %s321 = smul.addr %s320, 8
          %s322 = scalar_lea.vmem [#allocation8], %s321
          %323 = dma.done %s319, 128
        $region64: #{tpu_custom_call.1} parent=59 // pred_fallthru
          _
      $region60: #{tpu_custom_call.1} parent=5 // pred_fallthru
        _
    $region6: #{tpu_custom_call.1} parent=1 // loop_footer
      %s21 = sadd.s32 1, %s17
    $region7: #{tpu_custom_call.1} parent=1 // loop_footer_branch
      %16 = sbr.rel target = $region3
    $region8: #{tpu_custom_call.1} parent=1 // loop_exit
      _
    %324 = vsyncpa [#allocation4], 1
    %s325 = scalar_lea.sflag [#allocation4], 1
    %326 = vsyncpa %s325, 1
    %327 = vsyncpa [#allocation7], 1
    %s328 = scalar_lea.sflag [#allocation7], 1
    %329 = vsyncpa %s328, 1
    %330 = vsyncpa [#allocation5], 1
    %s331 = scalar_lea.sflag [#allocation5], 1
    %332 = vsyncpa %s331, 1

</llo_original>
